<compile_context>
chip_gen: v6e
topology: v6e:2x2x1
jax: 0.10.0
libtpu: 0.0.40
codegen_flags: <defaults>
</compile_context>

<pallas_src>
import functools

import jax
import jax.numpy as jnp
from jax.experimental import pallas as pl
from jax.experimental.pallas import tpu as pltpu

_SEED_HASH = 1540483477  # odd 31-bit constant (MurmurHash2 mix) for per-tile stream decorrelation


def _mask_and_scale(y, bits_u32, thresh31, inv_keep):
    # keep iff top-31 random bits >= round(p * 2**31)  ->  P(keep) = 1 - p.
    # (dropout probability quantized to 1/2^31 granularity -- negligible.)
    # Integer compare only; scale/select stay in y.dtype (bf16-native on v6e/v7x).
    r31 = (bits_u32 >> jnp.uint32(1)).astype(jnp.int32)
    keep = r31 >= jnp.int32(thresh31)
    return jnp.where(keep, y * jnp.asarray(inv_keep, dtype=y.dtype), jnp.zeros_like(y))


# ---------- 3-D path (D % 128 == 0): pe broadcasts over the size-1 sublane axis ----------

def _add_pe3_kernel(x_ref, pe_ref, o_ref):
    o_ref[...] = (x_ref[...] + pe_ref[...]).astype(o_ref.dtype)


def _add_pe3_dropout_prng_kernel(seed_ref, x_ref, pe_ref, o_ref, *, thresh31, inv_keep):
    pltpu.prng_seed(seed_ref[0] * jnp.int32(_SEED_HASH) + pl.program_id(0))
    y = x_ref[...] + pe_ref[...]
    bits = pltpu.bitcast(pltpu.prng_random_bits(y.shape), jnp.uint32)
    o_ref[...] = _mask_and_scale(y, bits, thresh31, inv_keep).astype(o_ref.dtype)


def _add_pe3_dropout_bits_kernel(x_ref, pe_ref, bits_ref, o_ref, *, thresh31, inv_keep):
    y = x_ref[...] + pe_ref[...]
    o_ref[...] = _mask_and_scale(y, bits_ref[...], thresh31, inv_keep).astype(o_ref.dtype)


# ---------- 2-D lane-fold fallback (small / odd D): batch folded into the lane axis ----------

def _add_pe2_kernel(x_ref, pe_ref, o_ref, *, batch):
    pe_row = jnp.tile(pe_ref[...], (1, batch))          # tiny (tile_s, D) -> (tile_s, B*D)
    o_ref[...] = (x_ref[...] + pe_row).astype(o_ref.dtype)


def _add_pe2_dropout_prng_kernel(seed_ref, x_ref, pe_ref, o_ref, *, batch, thresh31, inv_keep):
    pltpu.prng_seed(seed_ref[0] * jnp.int32(_SEED_HASH) + pl.program_id(0))
    pe_row = jnp.tile(pe_ref[...], (1, batch))
    y = x_ref[...] + pe_row
    bits = pltpu.bitcast(pltpu.prng_random_bits(y.shape), jnp.uint32)
    o_ref[...] = _mask_and_scale(y, bits, thresh31, inv_keep).astype(o_ref.dtype)


def _add_pe2_dropout_bits_kernel(x_ref, pe_ref, bits_ref, o_ref, *, batch, thresh31, inv_keep):
    pe_row = jnp.tile(pe_ref[...], (1, batch))
    y = x_ref[...] + pe_row
    o_ref[...] = _mask_and_scale(y, bits_ref[...], thresh31, inv_keep).astype(o_ref.dtype)


def learned_positional_encoding(x, pe, *, dropout_p=0.1, training=True, seed=0):
    """x: (S, B, D), pe: (S, 1, D) -> (S, B, D); matches nn.Dropout(p)(x + pe)."""
    S, B, D = x.shape
    assert pe.shape == (S, 1, D), pe.shape

    p = float(dropout_p)
    apply_dropout = training and p > 0.0
    if apply_dropout and p >= 1.0:
        # nn.Dropout(p=1) zeroes everything; avoid 1/(1-p) blow-up.
        return jnp.zeros_like(x)

    on_tpu = jax.default_backend() == "tpu"
    kind = ""
    if on_tpu:
        try:
            kind = (jax.devices()[0].device_kind or "").lower()
        except Exception:
            kind = ""
    is_v7x = "v7" in kind
    # v5e/v6e: 128 MiB physical VMEM -> bigger blocks + 64 MiB scoped limit.
    # v7x (64 MiB/TC, 2 TCs) and unknown chips: 2 MiB blocks, 32 MiB limit.
    if ("v5" in kind) or ("v6" in kind):
        target_block_bytes = 6 * 1024 * 1024
        vmem_limit = 64 * 1024 * 1024
    else:
        target_block_bytes = 2 * 1024 * 1024
        vmem_limit = 32 * 1024 * 1024

    itemsize = jnp.dtype(x.dtype).itemsize
    row_bytes = max(B * D * itemsize, 1)
    tile_s = min(max(8, (target_block_bytes // row_bytes) // 8 * 8), S)
    if is_v7x and S >= 32:
        # Keep >= 4 grid steps so both TensorCores get double-buffered work.
        tile_s = min(tile_s, max(8, (S // 4) // 8 * 8))
    grid = (pl.cdiv(S, tile_s),)

    compiler_params = (
        pltpu.CompilerParams(
            dimension_semantics=("parallel",),   # mem-bound elementwise; shard S across TCs
            vmem_limit_bytes=vmem_limit,
        )
        if on_tpu else None
    )

    use_3d = (D % 128) == 0
    if use_3d:
        # Lane-dense output; pe broadcasts over the size-1 sublane axis in-kernel.
        x_in, pe_in = x, pe
        x_spec = pl.BlockSpec((tile_s, B, D), lambda i, *_: (i, 0, 0))
        pe_spec = pl.BlockSpec((tile_s, 1, D), lambda i, *_: (i, 0, 0))
        out_spec = pl.BlockSpec((tile_s, B, D), lambda i, *_: (i, 0, 0))
        out_shape = jax.ShapeDtypeStruct((S, B, D), x.dtype)
        add_kernel = _add_pe3_kernel
        prng_kernel = _add_pe3_dropout_prng_kernel
        bits_kernel = _add_pe3_dropout_bits_kernel
    else:
        # Small d_model: fold the batch into the lane axis for wider stores.
        x_in = x.reshape(S, B * D)
        pe_in = pe.reshape(S, D)
        x_spec = pl.BlockSpec((tile_s, B * D), lambda i, *_: (i, 0))
        pe_spec = pl.BlockSpec((tile_s, D), lambda i, *_: (i, 0))
        out_spec = pl.BlockSpec((tile_s, B * D), lambda i, *_: (i, 0))
        out_shape = jax.ShapeDtypeStruct((S, B * D), x.dtype)
        add_kernel = functools.partial(_add_pe2_kernel, batch=B)
        prng_kernel = functools.partial(_add_pe2_dropout_prng_kernel, batch=B)
        bits_kernel = functools.partial(_add_pe2_dropout_bits_kernel, batch=B)

    if not apply_dropout:
        out = pl.pallas_call(
            add_kernel,
            out_shape=out_shape,
            grid=grid,
            in_specs=[x_spec, pe_spec],
            out_specs=out_spec,
            compiler_params=compiler_params,
        )(x_in, pe_in)
        return out.reshape(S, B, D)

    thresh31 = min(int(round(p * (1 << 31))), (1 << 31) - 1)
    inv_keep = 1.0 / (1.0 - p)

    if on_tpu:
        kernel = functools.partial(prng_kernel, thresh31=thresh31, inv_keep=inv_keep)
        seed_arr = jnp.asarray([seed], dtype=jnp.int32)
        out = pl.pallas_call(
            kernel,
            out_shape=out_shape,
            grid_spec=pltpu.PrefetchScalarGridSpec(
                num_scalar_prefetch=1,
                grid=grid,
                in_specs=[x_spec, pe_spec],
                out_specs=out_spec,
            ),
            compiler_params=compiler_params,
        )(seed_arr, x_in, pe_in)
    else:
        # TODO(synk): non-TPU fallback only -- pltpu.prng_seed has no lowering
        # off-TPU, so dropout bits are generated host-side and streamed in.
        kernel = functools.partial(bits_kernel, thresh31=thresh31, inv_keep=inv_keep)
        bits = jax.random.bits(jax.random.PRNGKey(seed), x_in.shape, dtype=jnp.uint32)
        out = pl.pallas_call(
            kernel,
            out_shape=out_shape,
            grid=grid,
            in_specs=[x_spec, pe_spec, x_spec],
            out_specs=out_spec,
            compiler_params=compiler_params,
        )(x_in, pe_in, bits)
    return out.reshape(S, B, D)


if __name__ == "__main__":
    P_DROP = 0.1
    key = jax.random.PRNGKey(0)
    kx, kpe, kx2, kpe2 = jax.random.split(key, 4)

    # Primary case: d_model multiple of 128 -> 3-D broadcast path (no jnp.tile).
    S, B, D = 8, 2, 128
    x = jax.random.normal(kx, (S, B, D), dtype=jnp.float32)
    # The module initializes pe to zeros; use small random values so the add is exercised.
    pe = 0.02 * jax.random.normal(kpe, (S, 1, D), dtype=jnp.float32)
    ref = x + pe

    out_eval = jax.block_until_ready(
        learned_positional_encoding(x, pe, dropout_p=P_DROP, training=False))
    assert out_eval.shape == (S, B, D)
    assert jnp.allclose(out_eval, ref, atol=1e-6), "eval-mode mismatch (3-D path)"

    out_train = jax.block_until_ready(
        learned_positional_encoding(x, pe, dropout_p=P_DROP, training=True, seed=0))
    scaled = ref / (1.0 - P_DROP)
    ok = jnp.all(
        jnp.isclose(out_train, 0.0, atol=1e-6)
        | jnp.isclose(out_train, scaled, atol=1e-5, rtol=1e-5))
    assert bool(ok), "training-mode dropout values mismatch (3-D path)"

    # Fallback case: small d_model (not a multiple of 128) -> lane-fold path.
    S2, B2, D2 = 8, 2, 32
    x_s = jax.random.normal(kx2, (S2, B2, D2), dtype=jnp.float32)
    pe_s = 0.02 * jax.random.normal(kpe2, (S2, 1, D2), dtype=jnp.float32)
    ref_s = x_s + pe_s

    out_eval_s = jax.block_until_ready(
        learned_positional_encoding(x_s, pe_s, dropout_p=P_DROP, training=False))
    assert jnp.allclose(out_eval_s, ref_s, atol=1e-6), "eval-mode mismatch (lane-fold path)"

    out_train_s = jax.block_until_ready(
        learned_positional_encoding(x_s, pe_s, dropout_p=P_DROP, training=True, seed=3))
    scaled_s = ref_s / (1.0 - P_DROP)
    ok_s = jnp.all(
        jnp.isclose(out_train_s, 0.0, atol=1e-6)
        | jnp.isclose(out_train_s, scaled_s, atol=1e-5, rtol=1e-5))
    assert bool(ok_s), "training-mode dropout values mismatch (lane-fold path)"

    print("KERNEL_OK")
</pallas_src>

<mosaic_0001>
module attributes {stable_mosaic.version = 11 : i64} {
  func.func @_add_pe3_kernel(%arg0: i32, %arg1: memref<8x2x128xf32, #tpu.memory_space<vmem>>, %arg2: memref<8x1x128xf32, #tpu.memory_space<vmem>>, %arg3: memref<8x2x128xf32, #tpu.memory_space<vmem>>) attributes {dimension_semantics = [#tpu.dimension_semantics<arbitrary>], iteration_bounds = array<i64: 1>, scalar_prefetch = 0 : i64, scratch_operands = 0 : i64, tpu.core_type = #tpu.core_type<tc>, window_params = [{transform_indices = @transform_0, window_bounds = array<i64: 8, 2, 128>}, {transform_indices = @transform_1, window_bounds = array<i64: 8, 1, 128>}, {transform_indices = @transform_2, window_bounds = array<i64: 8, 2, 128>}]} {
    %c0 = arith.constant 0 : index
    %c0_0 = arith.constant 0 : index
    %c0_1 = arith.constant 0 : index
    %0 = vector.load %arg1[%c0, %c0_0, %c0_1] : memref<8x2x128xf32, #tpu.memory_space<vmem>>, vector<8x2x128xf32>
    %c0_2 = arith.constant 0 : index
    %c0_3 = arith.constant 0 : index
    %c0_4 = arith.constant 0 : index
    %1 = vector.load %arg2[%c0_2, %c0_3, %c0_4] : memref<8x1x128xf32, #tpu.memory_space<vmem>>, vector<8x1x128xf32>
    %2 = vector.broadcast %1 : vector<8x1x128xf32> to vector<8x2x128xf32>
    %3 = arith.addf %0, %2 : vector<8x2x128xf32>
    %c0_5 = arith.constant 0 : index
    %c0_6 = arith.constant 0 : index
    %c0_7 = arith.constant 0 : index
    %4 = vector.load %arg3[%c0_5, %c0_6, %c0_7] : memref<8x2x128xf32, #tpu.memory_space<vmem>>, vector<8x2x128xf32>
    tpu.vector_store %arg3[%c0_5, %c0_6, %c0_7], %3 {strides = array<i32>} : memref<8x2x128xf32, #tpu.memory_space<vmem>>, vector<8x2x128xf32>,
    return
  }
  func.func @transform_0(%arg0: i32) -> (i32, i32, i32) {
    %c0_i32 = arith.constant 0 : i32
    %c0_i32_0 = arith.constant 0 : i32
    %c0_i32_1 = arith.constant 0 : i32
    return %arg0, %c0_i32, %c0_i32_0 : i32, i32, i32
  }
  func.func @transform_1(%arg0: i32) -> (i32, i32, i32) {
    %c0_i32 = arith.constant 0 : i32
    %c0_i32_0 = arith.constant 0 : i32
    %c0_i32_1 = arith.constant 0 : i32
    return %arg0, %c0_i32, %c0_i32_0 : i32, i32, i32
  }
  func.func @transform_2(%arg0: i32) -> (i32, i32, i32) {
    %c0_i32 = arith.constant 0 : i32
    %c0_i32_0 = arith.constant 0 : i32
    %c0_i32_1 = arith.constant 0 : i32
    return %arg0, %c0_i32, %c0_i32_0 : i32, i32, i32
  }
}

</mosaic_0001>

<llo_original>
// kernel: tpu_custom_call.1
$region0: #{tpu_custom_call.1}
  #allocation0 [shape = 'u32[]', space=smem, size = 0x4, offset = 0x4, fixed_abs, tag = 'smem constant byte address 0x4 - core index']
  #allocation1 [shape = 'u32[144,128]{1,0:T(1,128)}', space=vmem, size = 0x12000, scoped, tag = 'internal scratch']
  %s0 = inlined_call_operand.hbm [shape: f32[8,2,128], index: 0, kind: input, shape index: {}]
  %s1 = inlined_call_operand.hbm [shape: f32[8,1,128], index: 1, kind: input, shape index: {}]
  %s2 = inlined_call_operand.hbm [shape: f32[8,2,128], index: 2, kind: output, shape index: {}]
  %s3 = sld [smem:[#allocation0]]
  $region26: #{tpu_custom_call.1} parent=0
    _
  %s5 = ssub.s32 1, %s3
  %s6 = scalar_select 0, %s5, %s3
  $region1: #{tpu_custom_call.1} parent=0
    #allocation2 [shape = 'u8[8192]{0}', space=vmem, size = 0x2000, scoped, tag = 'input window, operand 0, single buffered']
    #allocation3 [shape = 's32[1]{0}', space=sflag, size = 0x4, scoped, tag = 'scoped memory for tpu_custom_call.1']
    #allocation4 [shape = 's32[1]{0}', space=sflag, size = 0x4, scoped, tag = 'scoped memory for tpu_custom_call.1']
    #allocation5 [shape = 'u8[4096]{0}', space=vmem, size = 0x1000, scoped, tag = 'input window, operand 1, single buffered']
    #allocation6 [shape = 's32[1]{0}', space=sflag, size = 0x4, scoped, tag = 'scoped memory for tpu_custom_call.1']
    #allocation7 [shape = 'u8[8192]{0}', space=vmem, size = 0x2000, scoped, tag = 'output window, operand 0, single buffered']
    %7 = vsyncpa [#allocation3], 0
    %8 = vsyncpa [#allocation6], 0
    %9 = vsyncpa [#allocation4], 0
    // Predicated region
    $region2: #{tpu_custom_call.1} parent=1 // pred_check
      _
    $region3: #{tpu_custom_call.1} parent=1 // pred_check_branch
      %11 = sbr.rel (0) target = $region5
    $region4: #{tpu_custom_call.1} parent=1 // pred_region
      %s13 = ssub.s32 256, 256
      %14 = vsyncadd [#allocation3], %s13
      %s15 = sshll.u32 [#allocation2], 4
      %s16 = int_to_ptr.vmem [resolvable:$true] %s15
      %21 = dma.hbm_to_vmem [thread:$0]  %s0, 256, %s16, [#allocation3], 32, 32, 2
    $region5: #{tpu_custom_call.1} parent=1 // pred_fallthru
      _
    // Predicated region
    $region6: #{tpu_custom_call.1} parent=1 // pred_check
      _
    $region7: #{tpu_custom_call.1} parent=1 // pred_check_branch
      %23 = sbr.rel (0) target = $region9
    $region8: #{tpu_custom_call.1} parent=1 // pred_region
      %s25 = ssub.s32 128, 128
      %26 = vsyncadd [#allocation6], %s25
      %s27 = sshll.u32 [#allocation5], 4
      %s28 = int_to_ptr.vmem [resolvable:$true] %s27
      %33 = dma.hbm_to_vmem [thread:$0]  %s1, 128, %s28, [#allocation6], 16, 16, 1
    $region9: #{tpu_custom_call.1} parent=1 // pred_fallthru
      _
    // Predicated region
    $region10: #{tpu_custom_call.1} parent=1 // pred_check
      _
    $region11: #{tpu_custom_call.1} parent=1 // pred_check_branch
      %35 = sbr.rel (0) target = $region13
    $region12: #{tpu_custom_call.1} parent=1 // pred_region
      %36 = dma.done [#allocation3], 256
    $region13: #{tpu_custom_call.1} parent=1 // pred_fallthru
      _
    // Predicated region
    $region14: #{tpu_custom_call.1} parent=1 // pred_check
      _
    $region15: #{tpu_custom_call.1} parent=1 // pred_check_branch
      %38 = sbr.rel (0) target = $region17
    $region16: #{tpu_custom_call.1} parent=1 // pred_region
      %39 = dma.done [#allocation6], 128
    $region17: #{tpu_custom_call.1} parent=1 // pred_fallthru
      _
    %v40 = vld [vmem:[#allocation2] sm:$0x3]
    %v41 = vld [vmem:[#allocation2 + $0x2] sm:$0x3]
    %v42 = vld [vmem:[#allocation2 + $0x4] sm:$0x3]
    %v43 = vld [vmem:[#allocation2 + $0x6] sm:$0x3]
    %v44 = vld [vmem:[#allocation2 + $0x8] sm:$0x3]
    %v45 = vld [vmem:[#allocation2 + $0xa] sm:$0x3]
    %v46 = vld [vmem:[#allocation2 + $0xc] sm:$0x3]
    %v47 = vld [vmem:[#allocation2 + $0xe] sm:$0x3]
    %v48 = vld [vmem:[#allocation5] sm:$0x1]
    %v49 = vld [vmem:[#allocation5 + $0x1] sm:$0x1]
    %v50 = vld [vmem:[#allocation5 + $0x2] sm:$0x1]
    %v51 = vld [vmem:[#allocation5 + $0x3] sm:$0x1]
    %v52 = vld [vmem:[#allocation5 + $0x4] sm:$0x1]
    %v53 = vld [vmem:[#allocation5 + $0x5] sm:$0x1]
    %v54 = vld [vmem:[#allocation5 + $0x6] sm:$0x1]
    %v55 = vld [vmem:[#allocation5 + $0x7] sm:$0x1]
    %v64 = vlaneseq
    %v65 = vshrl.u32 %v64, 7
    %v66 = vsub.s32 0, %v65
    %v67 = vrot.slane %v48, %v66
    %v68 = vlaneseq
    %v69 = vshrl.u32 %v68, 7
    %v70 = vsub.s32 0, %v69
    %v71 = vrot.slane %v49, %v70
    %v72 = vlaneseq
    %v73 = vshrl.u32 %v72, 7
    %v74 = vsub.s32 0, %v73
    %v75 = vrot.slane %v50, %v74
    %v76 = vlaneseq
    %v77 = vshrl.u32 %v76, 7
    %v78 = vsub.s32 0, %v77
    %v79 = vrot.slane %v51, %v78
    %v80 = vlaneseq
    %v81 = vshrl.u32 %v80, 7
    %v82 = vsub.s32 0, %v81
    %v83 = vrot.slane %v52, %v82
    %v84 = vlaneseq
    %v85 = vshrl.u32 %v84, 7
    %v86 = vsub.s32 0, %v85
    %v87 = vrot.slane %v53, %v86
    %v88 = vlaneseq
    %v89 = vshrl.u32 %v88, 7
    %v90 = vsub.s32 0, %v89
    %v91 = vrot.slane %v54, %v90
    %v92 = vlaneseq
    %v93 = vshrl.u32 %v92, 7
    %v94 = vsub.s32 0, %v93
    %v95 = vrot.slane %v55, %v94
    %v104 = vadd.f32 %v40, %v67
    %v105 = vadd.f32 %v41, %v71
    %v106 = vadd.f32 %v42, %v75
    %v107 = vadd.f32 %v43, %v79
    %v108 = vadd.f32 %v44, %v83
    %v109 = vadd.f32 %v45, %v87
    %v110 = vadd.f32 %v46, %v91
    %v111 = vadd.f32 %v47, %v95
    %112 = vst [vmem:[#allocation7] sm:$0x3] %v104
    %113 = vst [vmem:[#allocation7 + $0x2] sm:$0x3] %v105
    %114 = vst [vmem:[#allocation7 + $0x4] sm:$0x3] %v106
    %115 = vst [vmem:[#allocation7 + $0x6] sm:$0x3] %v107
    %116 = vst [vmem:[#allocation7 + $0x8] sm:$0x3] %v108
    %117 = vst [vmem:[#allocation7 + $0xa] sm:$0x3] %v109
    %118 = vst [vmem:[#allocation7 + $0xc] sm:$0x3] %v110
    %119 = vst [vmem:[#allocation7 + $0xe] sm:$0x3] %v111
    // Predicated region
    $region18: #{tpu_custom_call.1} parent=1 // pred_check
      _
    $region19: #{tpu_custom_call.1} parent=1 // pred_check_branch
      %121 = sbr.rel (0) target = $region21
    $region20: #{tpu_custom_call.1} parent=1 // pred_region
      %s123 = ssub.s32 256, 256
      %124 = vsyncadd [#allocation4], %s123
      %s125 = sshll.u32 [#allocation7], 4
      %s126 = int_to_ptr.vmem [resolvable:$true] %s125
      %131 = dma.vmem_to_hbm [thread:$0]  %s126, 256, %s2, [#allocation4], 32, 32, 2
    $region21: #{tpu_custom_call.1} parent=1 // pred_fallthru
      _
    // Predicated region
    $region22: #{tpu_custom_call.1} parent=1 // pred_check
      _
    $region23: #{tpu_custom_call.1} parent=1 // pred_check_branch
      %133 = sbr.rel (0) target = $region25
    $region24: #{tpu_custom_call.1} parent=1 // pred_region
      %134 = dma.done [#allocation4], 256
    $region25: #{tpu_custom_call.1} parent=1 // pred_fallthru
      _
    %135 = vsyncpa [#allocation3], 1
    %136 = vsyncpa [#allocation6], 1
    %137 = vsyncpa [#allocation4], 1

</llo_original>
